<compile_context>
chip_gen: v7x
topology: tpu7x:2x2x1
jax: 0.10.0
libtpu: 0.0.40
codegen_flags: <defaults>
</compile_context>

<pallas_src>
import jax
import jax.numpy as jnp
from jax.experimental import pallas as pl
from jax.experimental.pallas import tpu as pltpu  # noqa: F401  (kept for TPU-specific tuning hooks)

# Problem sizes consistent with nn.Conv2d(10, 100, 3)
N, CIN, H, W = 2, 10, 16, 16
COUT, KH, KW = 100, 3, 3
OH, OW = H - KH + 1, W - KW + 1            # 14, 14

M_ROWS = N * OH * OW                       # 392  (multiple of 8 -> sublane dense)
K_RAW = KH * KW * CIN                      # 90
K_PAD = 128                                # pad contraction dim to full MXU width
C_PAD = 128                                # pad Cout 100 -> 128 (one full lane vreg)


def conv_relu_kernel(p_ref, w_ref, b_ref, o_ref):
    """Single fused matmul + bias + ReLU.

    p_ref: (M_ROWS, K_PAD)  im2col patches, zero-padded K   (VMEM)
    w_ref: (K_PAD, C_PAD)   reshaped/zero-padded weights    (VMEM)
    b_ref: (1, C_PAD)       zero-padded bias                (VMEM)
    o_ref: (M_ROWS, C_PAD)  lane-dense output slab          (VMEM)
    """
    acc = jnp.dot(p_ref[...], w_ref[...], preferred_element_type=jnp.float32)
    o_ref[...] = jnp.maximum(acc + b_ref[...], 0.0).astype(o_ref.dtype)


def conv_relu_pallas(x_nchw, w_oihw, bias):
    """x_nchw: (N, Cin, H, W) f32; w_oihw: (Cout, Cin, KH, KW) f32; bias: (Cout,) f32."""
    # ---- layout plumbing (outside the kernel) -------------------------------------------
    x_nhwc = jnp.transpose(x_nchw, (0, 2, 3, 1))                     # (N, H, W, Cin)

    # im2col: tap order (kh, kw, cin) concatenated along the channel axis.
    patches = jnp.concatenate(
        [x_nhwc[:, kh:kh + OH, kw:kw + OW, :] for kh in range(KH) for kw in range(KW)],
        axis=-1,
    ).reshape(M_ROWS, K_RAW)                                          # (392, 90)
    patches = jnp.pad(patches, ((0, 0), (0, K_PAD - K_RAW)))          # (392, 128)

    # Weights to (KH*KW*Cin, Cout) matching the tap order above, then zero-pad to (128, 128).
    w_mat = jnp.transpose(w_oihw, (2, 3, 1, 0)).reshape(K_RAW, COUT)  # (90, 100)
    w_mat = jnp.pad(w_mat, ((0, K_PAD - K_RAW), (0, C_PAD - COUT)))   # (128, 128)

    b_row = jnp.pad(bias, (0, C_PAD - COUT)).reshape(1, C_PAD)        # (1, 128)

    # ---- the fused kernel ----------------------------------------------------------------
    out2d = pl.pallas_call(
        conv_relu_kernel,
        out_shape=jax.ShapeDtypeStruct((M_ROWS, C_PAD), jnp.float32),
        in_specs=[
            pl.BlockSpec((M_ROWS, K_PAD), lambda: (0, 0)),
            pl.BlockSpec((K_PAD, C_PAD), lambda: (0, 0)),
            pl.BlockSpec((1, C_PAD), lambda: (0, 0)),
        ],
        out_specs=pl.BlockSpec((M_ROWS, C_PAD), lambda: (0, 0)),
        cost_estimate=pl.CostEstimate(
            flops=2 * M_ROWS * K_PAD * C_PAD,
            transcendentals=0,
            bytes_accessed=4 * (M_ROWS * K_PAD + K_PAD * C_PAD + M_ROWS * C_PAD),
        ),
    )(patches, w_mat, b_row)

    # Strip the padded lanes and restore NCHW to mirror the PyTorch module output.
    out_nhwc = out2d[:, :COUT].reshape(N, OH, OW, COUT)
    return jnp.transpose(out_nhwc, (0, 3, 1, 2))                      # (N, Cout, OH, OW)


if __name__ == "__main__":
    key = jax.random.PRNGKey(0)
    kx, kw, kb = jax.random.split(key, 3)

    # Deterministic synthetic parameters (shapes from nn.Conv2d(10, 100, 3)).
    x = jax.random.normal(kx, (N, CIN, H, W), dtype=jnp.float32)
    w = jax.random.normal(kw, (COUT, CIN, KH, KW), dtype=jnp.float32) * 0.1
    b = jax.random.normal(kb, (COUT,), dtype=jnp.float32) * 0.1

    out = jax.jit(conv_relu_pallas)(x, w, b)
    out = jax.block_until_ready(out)

    # Sanity-check against the pure-JAX reference (conv NCHW + bias + ReLU).
    ref = jax.lax.conv_general_dilated(
        x, w, window_strides=(1, 1), padding="VALID",
        dimension_numbers=("NCHW", "OIHW", "NCHW"))
    ref = jnp.maximum(ref + b.reshape(1, COUT, 1, 1), 0.0)
    assert out.shape == (N, COUT, OH, OW)
    assert jnp.allclose(out, ref, atol=1e-4, rtol=1e-4)

    print("KERNEL_OK")
</pallas_src>

<mosaic_0001>
module attributes {stable_mosaic.version = 11 : i64} {
  func.func @conv_relu_kernel(%arg0: memref<392x128xf32, #tpu.memory_space<vmem>>, %arg1: memref<128x128xf32, #tpu.memory_space<vmem>>, %arg2: memref<1x128xf32, #tpu.memory_space<vmem>>, %arg3: memref<392x128xf32, #tpu.memory_space<vmem>>) attributes {dimension_semantics = [], scalar_prefetch = 0 : i64, scratch_operands = 0 : i64, tpu.core_type = #tpu.core_type<tc>} {
    %c0 = arith.constant 0 : index
    %c0_0 = arith.constant 0 : index
    %0 = vector.load %arg0[%c0, %c0_0] : memref<392x128xf32, #tpu.memory_space<vmem>>, vector<392x128xf32>
    %c0_1 = arith.constant 0 : index
    %c0_2 = arith.constant 0 : index
    %1 = vector.load %arg1[%c0_1, %c0_2] : memref<128x128xf32, #tpu.memory_space<vmem>>, vector<128x128xf32>
    %cst = arith.constant dense<0.000000e+00> : vector<392x128xf32>
    %2 = tpu.matmul %0, %1, %cst {dimension_numbers = #tpu.dot_dimension_numbers<[1], [0], [0], [1], [0, 0, 1, 1], [], []>} : vector<392x128xf32>, vector<128x128xf32>, vector<392x128xf32> -> vector<392x128xf32>
    %c0_3 = arith.constant 0 : index
    %c0_4 = arith.constant 0 : index
    %3 = vector.load %arg2[%c0_3, %c0_4] : memref<1x128xf32, #tpu.memory_space<vmem>>, vector<1x128xf32>
    %4 = vector.broadcast %3 : vector<1x128xf32> to vector<392x128xf32>
    %5 = arith.addf %2, %4 : vector<392x128xf32>
    %cst_5 = arith.constant 0.000000e+00 : f32
    %6 = vector.broadcast %cst_5 : f32 to vector<392x128xf32>
    %7 = arith.maximumf %5, %6 : vector<392x128xf32>
    %c0_6 = arith.constant 0 : index
    %c0_7 = arith.constant 0 : index
    %8 = vector.load %arg3[%c0_6, %c0_7] : memref<392x128xf32, #tpu.memory_space<vmem>>, vector<392x128xf32>
    tpu.vector_store %arg3[%c0_6, %c0_7], %7 {strides = array<i32>} : memref<392x128xf32, #tpu.memory_space<vmem>>, vector<392x128xf32>,
    return
  }
}

</mosaic_0001>

<llo_original>
// kernel: conv_relu_pallas.1
$region0: #{conv_relu_pallas.1}
  #allocation0 [shape = 'u32[]', space=smem, size = 0x4, offset = 0x4, fixed_abs, tag = 'smem constant byte address 0x4 - core index']
  #allocation1 [shape = 'u32[144,128]{1,0:T(1,128)}', space=vmem, size = 0x12000, scoped, tag = 'internal scratch']
  %s0 = inlined_call_operand.vmem [shape: f32[392,128], index: 0, kind: input, shape index: {}]
  %s1 = inlined_call_operand.vmem [shape: f32[128,128], index: 1, kind: input, shape index: {}]
  %s2 = inlined_call_operand.vmem [shape: f32[1,128], index: 2, kind: input, shape index: {}]
  %s3 = inlined_call_operand.vmem [shape: f32[392,128], index: 3, kind: output, shape index: {}]
  %s4 = sld [smem:[#allocation0]]
  $region22: #{conv_relu_pallas.1} parent=0
    _
  %s6 = ssub.s32 1, %s4
  %s7 = scalar_select 0, %s6, %s4
  // Predicated region
  $region2: #{conv_relu_pallas.1} parent=0 // pred_check
    _
  $region3: #{conv_relu_pallas.1} parent=0 // pred_check_branch
    %9 = sbr.rel (0) target = $region5
  $region4: #{conv_relu_pallas.1} parent=0 // pred_region
    _
  $region5: #{conv_relu_pallas.1} parent=0 // pred_fallthru
    _
  // Predicated region
  $region6: #{conv_relu_pallas.1} parent=0 // pred_check
    _
  $region7: #{conv_relu_pallas.1} parent=0 // pred_check_branch
    %11 = sbr.rel (0) target = $region9
  $region8: #{conv_relu_pallas.1} parent=0 // pred_region
    _
  $region9: #{conv_relu_pallas.1} parent=0 // pred_fallthru
    _
  // Predicated region
  $region10: #{conv_relu_pallas.1} parent=0 // pred_check
    _
  $region11: #{conv_relu_pallas.1} parent=0 // pred_check_branch
    %13 = sbr.rel (0) target = $region13
  $region12: #{conv_relu_pallas.1} parent=0 // pred_region
    _
  $region13: #{conv_relu_pallas.1} parent=0 // pred_fallthru
    _
  %v14 = vld [vmem:[%s0] sm:$0xff]
  %v15 = vld [vmem:[%s0 + $0x8] sm:$0xff]
  %v16 = vld [vmem:[%s0 + $0x10] sm:$0xff]
  %v17 = vld [vmem:[%s0 + $0x18] sm:$0xff]
  %v18 = vld [vmem:[%s0 + $0x20] sm:$0xff]
  %v19 = vld [vmem:[%s0 + $0x28] sm:$0xff]
  %v20 = vld [vmem:[%s0 + $0x30] sm:$0xff]
  %v21 = vld [vmem:[%s0 + $0x38] sm:$0xff]
  %v22 = vld [vmem:[%s0 + $0x40] sm:$0xff]
  %v23 = vld [vmem:[%s0 + $0x48] sm:$0xff]
  %v24 = vld [vmem:[%s0 + $0x50] sm:$0xff]
  %v25 = vld [vmem:[%s0 + $0x58] sm:$0xff]
  %v26 = vld [vmem:[%s0 + $0x60] sm:$0xff]
  %v27 = vld [vmem:[%s0 + $0x68] sm:$0xff]
  %v28 = vld [vmem:[%s0 + $0x70] sm:$0xff]
  %v29 = vld [vmem:[%s0 + $0x78] sm:$0xff]
  %v30 = vld [vmem:[%s0 + $0x80] sm:$0xff]
  %v31 = vld [vmem:[%s0 + $0x88] sm:$0xff]
  %v32 = vld [vmem:[%s0 + $0x90] sm:$0xff]
  %v33 = vld [vmem:[%s0 + $0x98] sm:$0xff]
  %v34 = vld [vmem:[%s0 + $0xa0] sm:$0xff]
  %v35 = vld [vmem:[%s0 + $0xa8] sm:$0xff]
  %v36 = vld [vmem:[%s0 + $0xb0] sm:$0xff]
  %v37 = vld [vmem:[%s0 + $0xb8] sm:$0xff]
  %v38 = vld [vmem:[%s0 + $0xc0] sm:$0xff]
  %v39 = vld [vmem:[%s0 + $0xc8] sm:$0xff]
  %v40 = vld [vmem:[%s0 + $0xd0] sm:$0xff]
  %v41 = vld [vmem:[%s0 + $0xd8] sm:$0xff]
  %v42 = vld [vmem:[%s0 + $0xe0] sm:$0xff]
  %v43 = vld [vmem:[%s0 + $0xe8] sm:$0xff]
  %v44 = vld [vmem:[%s0 + $0xf0] sm:$0xff]
  %v45 = vld [vmem:[%s0 + $0xf8] sm:$0xff]
  %v46 = vld [vmem:[%s0 + $0x100] sm:$0xff]
  %v47 = vld [vmem:[%s0 + $0x108] sm:$0xff]
  %v48 = vld [vmem:[%s0 + $0x110] sm:$0xff]
  %v49 = vld [vmem:[%s0 + $0x118] sm:$0xff]
  %v50 = vld [vmem:[%s0 + $0x120] sm:$0xff]
  %v51 = vld [vmem:[%s0 + $0x128] sm:$0xff]
  %v52 = vld [vmem:[%s0 + $0x130] sm:$0xff]
  %v53 = vld [vmem:[%s0 + $0x138] sm:$0xff]
  %v54 = vld [vmem:[%s0 + $0x140] sm:$0xff]
  %v55 = vld [vmem:[%s0 + $0x148] sm:$0xff]
  %v56 = vld [vmem:[%s0 + $0x150] sm:$0xff]
  %v57 = vld [vmem:[%s0 + $0x158] sm:$0xff]
  %v58 = vld [vmem:[%s0 + $0x160] sm:$0xff]
  %v59 = vld [vmem:[%s0 + $0x168] sm:$0xff]
  %v60 = vld [vmem:[%s0 + $0x170] sm:$0xff]
  %v61 = vld [vmem:[%s0 + $0x178] sm:$0xff]
  %v62 = vld [vmem:[%s0 + $0x180] sm:$0xff]
  %v63 = vld [vmem:[%s1] sm:$0xff]
  %v64 = vld [vmem:[%s1 + $0x8] sm:$0xff]
  %v65 = vld [vmem:[%s1 + $0x10] sm:$0xff]
  %v66 = vld [vmem:[%s1 + $0x18] sm:$0xff]
  %v67 = vld [vmem:[%s1 + $0x20] sm:$0xff]
  %v68 = vld [vmem:[%s1 + $0x28] sm:$0xff]
  %v69 = vld [vmem:[%s1 + $0x30] sm:$0xff]
  %v70 = vld [vmem:[%s1 + $0x38] sm:$0xff]
  %v71 = vld [vmem:[%s1 + $0x40] sm:$0xff]
  %v72 = vld [vmem:[%s1 + $0x48] sm:$0xff]
  %v73 = vld [vmem:[%s1 + $0x50] sm:$0xff]
  %v74 = vld [vmem:[%s1 + $0x58] sm:$0xff]
  %v75 = vld [vmem:[%s1 + $0x60] sm:$0xff]
  %v76 = vld [vmem:[%s1 + $0x68] sm:$0xff]
  %v77 = vld [vmem:[%s1 + $0x70] sm:$0xff]
  %v78 = vld [vmem:[%s1 + $0x78] sm:$0xff]
  %v79 = vld [vmem:[%s2] sm:$0x1]
  %v81 = vlaneseq
  %v82 = vshrl.u32 %v81, 7
  %v83 = vsub.s32 0, %v82
  %v84 = vrot.slane %v79, %v83
  %86 = vmatprep.subr.mxu0 0.0
  %87 = vmatpush1.msra.mxu0 %v63
  %88 = vmatprep.subr.mxu0 0.0
  %89 = vmatpush1.msra.mxu0 %v64
  %90 = vmatprep.subr.mxu0 0.0
  %91 = vmatpush1.msra.mxu0 %v65
  %92 = vmatprep.subr.mxu0 0.0
  %93 = vmatpush1.msra.mxu0 %v66
  %94 = vmatprep.subr.mxu0 0.0
  %95 = vmatpush1.msra.mxu0 %v67
  %96 = vmatprep.subr.mxu0 0.0
  %97 = vmatpush1.msra.mxu0 %v68
  %98 = vmatprep.subr.mxu0 0.0
  %99 = vmatpush1.msra.mxu0 %v69
  %100 = vmatprep.subr.mxu0 0.0
  %101 = vmatpush1.msra.mxu0 %v70
  %102 = vmatprep.subr.mxu0 0.0
  %103 = vmatpush1.msra.mxu0 %v71
  %104 = vmatprep.subr.mxu0 0.0
  %105 = vmatpush1.msra.mxu0 %v72
  %106 = vmatprep.subr.mxu0 0.0
  %107 = vmatpush1.msra.mxu0 %v73
  %108 = vmatprep.subr.mxu0 0.0
  %109 = vmatpush1.msra.mxu0 %v74
  %110 = vmatprep.subr.mxu0 0.0
  %111 = vmatpush1.msra.mxu0 %v75
  %112 = vmatprep.subr.mxu0 0.0
  %113 = vmatpush1.msra.mxu0 %v76
  %114 = vmatprep.subr.mxu0 0.0
  %115 = vmatpush1.msra.mxu0 %v77
  %116 = vmatprep.subr.mxu0 0.0
  %117 = vmatpush1.msra.mxu0 %v78
  %118 = vmatprep.subr.mxu0 0.0
  %119 = vmatpush1.msra.mxu0 0.0
  %120 = vmatprep.subr.mxu0 0.0
  %121 = vmatpush1.msra.mxu0 0.0
  %122 = vmatprep.subr.mxu0 0.0
  %123 = vmatpush1.msra.mxu0 0.0
  %124 = vmatprep.subr.mxu0 0.0
  %125 = vmatpush1.msra.mxu0 0.0
  %126 = vmatprep.subr.mxu0 0.0
  %127 = vmatpush1.msra.mxu0 0.0
  %128 = vmatprep.subr.mxu0 0.0
  %129 = vmatpush1.msra.mxu0 0.0
  %130 = vmatprep.subr.mxu0 0.0
  %131 = vmatpush1.msra.mxu0 0.0
  %132 = vmatprep.subr.mxu0 0.0
  %133 = vmatpush1.msra.mxu0 0.0
  %134 = vmatprep.subr.mxu0 0.0
  %135 = vmatpush1.msra.mxu0 0.0
  %136 = vmatprep.subr.mxu0 0.0
  %137 = vmatpush1.msra.mxu0 0.0
  %138 = vmatprep.subr.mxu0 0.0
  %139 = vmatpush1.msra.mxu0 0.0
  %140 = vmatprep.subr.mxu0 0.0
  %141 = vmatpush1.msra.mxu0 0.0
  %142 = vmatprep.subr.mxu0 0.0
  %143 = vmatpush1.msra.mxu0 0.0
  %144 = vmatprep.subr.mxu0 0.0
  %145 = vmatpush1.msra.mxu0 0.0
  %146 = vmatprep.subr.mxu0 0.0
  %147 = vmatpush1.msra.mxu0 0.0
  %148 = vmatprep.subr.mxu0 0.0
  %149 = vmatpush1.msra.mxu0 0.0
  %150 = vmatprep.mubr.f32.mxu0 0.0
  %151 = vmatmul.mubr.f32.gmra.mrb[0].mxu0 %v14
  %v152 = vpop.f32.mrb[0].mxu0
  %v153 = vadd.f32 %v84, %v152
  %v154 = vpop.f32.mrb[0].mxu0
  %155 = vmatprep.mubr.f32.mxu0 0.0
  %156 = vmatmul.mubr.f32.gmra.mrb[0].mxu0 %v15
  %v157 = vpop.f32.mrb[0].mxu0
  %v158 = vadd.f32 %v84, %v157
  %v159 = vpop.f32.mrb[0].mxu0
  %160 = vmatprep.mubr.f32.mxu0 0.0
  %161 = vmatmul.mubr.f32.gmra.mrb[0].mxu0 %v16
  %v162 = vpop.f32.mrb[0].mxu0
  %v163 = vadd.f32 %v84, %v162
  %v164 = vpop.f32.mrb[0].mxu0
  %165 = vmatprep.mubr.f32.mxu0 0.0
  %166 = vmatmul.mubr.f32.gmra.mrb[0].mxu0 %v17
  %v167 = vpop.f32.mrb[0].mxu0
  %v168 = vadd.f32 %v84, %v167
  %v169 = vpop.f32.mrb[0].mxu0
  %170 = vmatprep.mubr.f32.mxu0 0.0
  %171 = vmatmul.mubr.f32.gmra.mrb[0].mxu0 %v18
  %v172 = vpop.f32.mrb[0].mxu0
  %v173 = vadd.f32 %v84, %v172
  %v174 = vpop.f32.mrb[0].mxu0
  %175 = vmatprep.mubr.f32.mxu0 0.0
  %176 = vmatmul.mubr.f32.gmra.mrb[0].mxu0 %v19
  %v177 = vpop.f32.mrb[0].mxu0
  %v178 = vadd.f32 %v84, %v177
  %v179 = vpop.f32.mrb[0].mxu0
  %180 = vmatprep.mubr.f32.mxu0 0.0
  %181 = vmatmul.mubr.f32.gmra.mrb[0].mxu0 %v20
  %v182 = vpop.f32.mrb[0].mxu0
  %v183 = vadd.f32 %v84, %v182
  %v184 = vpop.f32.mrb[0].mxu0
  %185 = vmatprep.mubr.f32.mxu0 0.0
  %186 = vmatmul.mubr.f32.gmra.mrb[0].mxu0 %v21
  %v187 = vpop.f32.mrb[0].mxu0
  %v188 = vadd.f32 %v84, %v187
  %v189 = vpop.f32.mrb[0].mxu0
  %190 = vmatprep.mubr.f32.mxu0 0.0
  %191 = vmatmul.mubr.f32.gmra.mrb[0].mxu0 %v22
  %v192 = vpop.f32.mrb[0].mxu0
  %v193 = vadd.f32 %v84, %v192
  %v194 = vpop.f32.mrb[0].mxu0
  %195 = vmatprep.mubr.f32.mxu0 0.0
  %196 = vmatmul.mubr.f32.gmra.mrb[0].mxu0 %v23
  %v197 = vpop.f32.mrb[0].mxu0
  %v198 = vadd.f32 %v84, %v197
  %v199 = vpop.f32.mrb[0].mxu0
  %200 = vmatprep.mubr.f32.mxu0 0.0
  %201 = vmatmul.mubr.f32.gmra.mrb[0].mxu0 %v24
  %v202 = vpop.f32.mrb[0].mxu0
  %v203 = vadd.f32 %v84, %v202
  %v204 = vpop.f32.mrb[0].mxu0
  %205 = vmatprep.mubr.f32.mxu0 0.0
  %206 = vmatmul.mubr.f32.gmra.mrb[0].mxu0 %v25
  %v207 = vpop.f32.mrb[0].mxu0
  %v208 = vadd.f32 %v84, %v207
  %v209 = vpop.f32.mrb[0].mxu0
  %210 = vmatprep.mubr.f32.mxu0 0.0
  %211 = vmatmul.mubr.f32.gmra.mrb[0].mxu0 %v26
  %v212 = vpop.f32.mrb[0].mxu0
  %v213 = vadd.f32 %v84, %v212
  %v214 = vpop.f32.mrb[0].mxu0
  %215 = vmatprep.mubr.f32.mxu0 0.0
  %216 = vmatmul.mubr.f32.gmra.mrb[0].mxu0 %v27
  %v217 = vpop.f32.mrb[0].mxu0
  %v218 = vadd.f32 %v84, %v217
  %v219 = vpop.f32.mrb[0].mxu0
  %220 = vmatprep.mubr.f32.mxu0 0.0
  %221 = vmatmul.mubr.f32.gmra.mrb[0].mxu0 %v28
  %v222 = vpop.f32.mrb[0].mxu0
  %v223 = vadd.f32 %v84, %v222
  %v224 = vpop.f32.mrb[0].mxu0
  %225 = vmatprep.mubr.f32.mxu0 0.0
  %226 = vmatmul.mubr.f32.gmra.mrb[0].mxu0 %v29
  %v227 = vpop.f32.mrb[0].mxu0
  %v228 = vadd.f32 %v84, %v227
  %v229 = vpop.f32.mrb[0].mxu0
  %230 = vmatprep.mubr.f32.mxu0 0.0
  %231 = vmatmul.mubr.f32.gmra.mrb[0].mxu0 %v30
  %v232 = vpop.f32.mrb[0].mxu0
  %v233 = vadd.f32 %v84, %v232
  %v234 = vpop.f32.mrb[0].mxu0
  %235 = vmatprep.mubr.f32.mxu0 0.0
  %236 = vmatmul.mubr.f32.gmra.mrb[0].mxu0 %v31
  %v237 = vpop.f32.mrb[0].mxu0
  %v238 = vadd.f32 %v84, %v237
  %v239 = vpop.f32.mrb[0].mxu0
  %240 = vmatprep.mubr.f32.mxu0 0.0
  %241 = vmatmul.mubr.f32.gmra.mrb[0].mxu0 %v32
  %v242 = vpop.f32.mrb[0].mxu0
  %v243 = vadd.f32 %v84, %v242
  %v244 = vpop.f32.mrb[0].mxu0
  %245 = vmatprep.mubr.f32.mxu0 0.0
  %246 = vmatmul.mubr.f32.gmra.mrb[0].mxu0 %v33
  %v247 = vpop.f32.mrb[0].mxu0
  %v248 = vadd.f32 %v84, %v247
  %v249 = vpop.f32.mrb[0].mxu0
  %250 = vmatprep.mubr.f32.mxu0 0.0
  %251 = vmatmul.mubr.f32.gmra.mrb[0].mxu0 %v34
  %v252 = vpop.f32.mrb[0].mxu0
  %v253 = vadd.f32 %v84, %v252
  %v254 = vpop.f32.mrb[0].mxu0
  %255 = vmatprep.mubr.f32.mxu0 0.0
  %256 = vmatmul.mubr.f32.gmra.mrb[0].mxu0 %v35
  %v257 = vpop.f32.mrb[0].mxu0
  %v258 = vadd.f32 %v84, %v257
  %v259 = vpop.f32.mrb[0].mxu0
  %260 = vmatprep.mubr.f32.mxu0 0.0
  %261 = vmatmul.mubr.f32.gmra.mrb[0].mxu0 %v36
  %v262 = vpop.f32.mrb[0].mxu0
  %v263 = vadd.f32 %v84, %v262
  %v264 = vpop.f32.mrb[0].mxu0
  %265 = vmatprep.mubr.f32.mxu0 0.0
  %266 = vmatmul.mubr.f32.gmra.mrb[0].mxu0 %v37
  %v267 = vpop.f32.mrb[0].mxu0
  %v268 = vadd.f32 %v84, %v267
  %v269 = vpop.f32.mrb[0].mxu0
  %270 = vmatprep.mubr.f32.mxu0 0.0
  %271 = vmatmul.mubr.f32.gmra.mrb[0].mxu0 %v38
  %v272 = vpop.f32.mrb[0].mxu0
  %v273 = vadd.f32 %v84, %v272
  %v274 = vpop.f32.mrb[0].mxu0
  %275 = vmatprep.mubr.f32.mxu0 0.0
  %276 = vmatmul.mubr.f32.gmra.mrb[0].mxu0 %v39
  %v277 = vpop.f32.mrb[0].mxu0
  %v278 = vadd.f32 %v84, %v277
  %v279 = vpop.f32.mrb[0].mxu0
  %280 = vmatprep.mubr.f32.mxu0 0.0
  %281 = vmatmul.mubr.f32.gmra.mrb[0].mxu0 %v40
  %v282 = vpop.f32.mrb[0].mxu0
  %v283 = vadd.f32 %v84, %v282
  %v284 = vpop.f32.mrb[0].mxu0
  %285 = vmatprep.mubr.f32.mxu0 0.0
  %286 = vmatmul.mubr.f32.gmra.mrb[0].mxu0 %v41
  %v287 = vpop.f32.mrb[0].mxu0
  %v288 = vadd.f32 %v84, %v287
  %v289 = vpop.f32.mrb[0].mxu0
  %290 = vmatprep.mubr.f32.mxu0 0.0
  %291 = vmatmul.mubr.f32.gmra.mrb[0].mxu0 %v42
  %v292 = vpop.f32.mrb[0].mxu0
  %v293 = vadd.f32 %v84, %v292
  %v294 = vpop.f32.mrb[0].mxu0
  %295 = vmatprep.mubr.f32.mxu0 0.0
  %296 = vmatmul.mubr.f32.gmra.mrb[0].mxu0 %v43
  %v297 = vpop.f32.mrb[0].mxu0
  %v298 = vadd.f32 %v84, %v297
  %v299 = vpop.f32.mrb[0].mxu0
  %300 = vmatprep.mubr.f32.mxu0 0.0
  %301 = vmatmul.mubr.f32.gmra.mrb[0].mxu0 %v44
  %v302 = vpop.f32.mrb[0].mxu0
  %v303 = vadd.f32 %v84, %v302
  %v304 = vpop.f32.mrb[0].mxu0
  %305 = vmatprep.mubr.f32.mxu0 0.0
  %306 = vmatmul.mubr.f32.gmra.mrb[0].mxu0 %v45
  %v307 = vpop.f32.mrb[0].mxu0
  %v308 = vadd.f32 %v84, %v307
  %v309 = vpop.f32.mrb[0].mxu0
  %310 = vmatprep.mubr.f32.mxu0 0.0
  %311 = vmatmul.mubr.f32.gmra.mrb[0].mxu0 %v46
  %v312 = vpop.f32.mrb[0].mxu0
  %v313 = vadd.f32 %v84, %v312
  %v314 = vpop.f32.mrb[0].mxu0
  %315 = vmatprep.mubr.f32.mxu0 0.0
  %316 = vmatmul.mubr.f32.gmra.mrb[0].mxu0 %v47
  %v317 = vpop.f32.mrb[0].mxu0
  %v318 = vadd.f32 %v84, %v317
  %v319 = vpop.f32.mrb[0].mxu0
  %320 = vmatprep.mubr.f32.mxu0 0.0
  %321 = vmatmul.mubr.f32.gmra.mrb[0].mxu0 %v48
  %v322 = vpop.f32.mrb[0].mxu0
  %v323 = vadd.f32 %v84, %v322
  %v324 = vpop.f32.mrb[0].mxu0
  %325 = vmatprep.mubr.f32.mxu0 0.0
  %326 = vmatmul.mubr.f32.gmra.mrb[0].mxu0 %v49
  %v327 = vpop.f32.mrb[0].mxu0
  %v328 = vadd.f32 %v84, %v327
  %v329 = vpop.f32.mrb[0].mxu0
  %330 = vmatprep.mubr.f32.mxu0 0.0
  %331 = vmatmul.mubr.f32.gmra.mrb[0].mxu0 %v50
  %v332 = vpop.f32.mrb[0].mxu0
  %v333 = vadd.f32 %v84, %v332
  %v334 = vpop.f32.mrb[0].mxu0
  %335 = vmatprep.mubr.f32.mxu0 0.0
  %336 = vmatmul.mubr.f32.gmra.mrb[0].mxu0 %v51
  %v337 = vpop.f32.mrb[0].mxu0
  %v338 = vadd.f32 %v84, %v337
  %v339 = vpop.f32.mrb[0].mxu0
  %340 = vmatprep.mubr.f32.mxu0 0.0
  %341 = vmatmul.mubr.f32.gmra.mrb[0].mxu0 %v52
  %v342 = vpop.f32.mrb[0].mxu0
  %v343 = vadd.f32 %v84, %v342
  %v344 = vpop.f32.mrb[0].mxu0
  %345 = vmatprep.mubr.f32.mxu0 0.0
  %346 = vmatmul.mubr.f32.gmra.mrb[0].mxu0 %v53
  %v347 = vpop.f32.mrb[0].mxu0
  %v348 = vadd.f32 %v84, %v347
  %v349 = vpop.f32.mrb[0].mxu0
  %350 = vmatprep.mubr.f32.mxu0 0.0
  %351 = vmatmul.mubr.f32.gmra.mrb[0].mxu0 %v54
  %v352 = vpop.f32.mrb[0].mxu0
  %v353 = vadd.f32 %v84, %v352
  %v354 = vpop.f32.mrb[0].mxu0
  %355 = vmatprep.mubr.f32.mxu0 0.0
  %356 = vmatmul.mubr.f32.gmra.mrb[0].mxu0 %v55
  %v357 = vpop.f32.mrb[0].mxu0
  %v358 = vadd.f32 %v84, %v357
  %v359 = vpop.f32.mrb[0].mxu0
  %360 = vmatprep.mubr.f32.mxu0 0.0
  %361 = vmatmul.mubr.f32.gmra.mrb[0].mxu0 %v56
  %v362 = vpop.f32.mrb[0].mxu0
  %v363 = vadd.f32 %v84, %v362
  %v364 = vpop.f32.mrb[0].mxu0
  %365 = vmatprep.mubr.f32.mxu0 0.0
  %366 = vmatmul.mubr.f32.gmra.mrb[0].mxu0 %v57
  %v367 = vpop.f32.mrb[0].mxu0
  %v368 = vadd.f32 %v84, %v367
  %v369 = vpop.f32.mrb[0].mxu0
  %370 = vmatprep.mubr.f32.mxu0 0.0
  %371 = vmatmul.mubr.f32.gmra.mrb[0].mxu0 %v58
  %v372 = vpop.f32.mrb[0].mxu0
  %v373 = vadd.f32 %v84, %v372
  %v374 = vpop.f32.mrb[0].mxu0
  %375 = vmatprep.mubr.f32.mxu0 0.0
  %376 = vmatmul.mubr.f32.gmra.mrb[0].mxu0 %v59
  %v377 = vpop.f32.mrb[0].mxu0
  %v378 = vadd.f32 %v84, %v377
  %v379 = vpop.f32.mrb[0].mxu0
  %380 = vmatprep.mubr.f32.mxu0 0.0
  %381 = vmatmul.mubr.f32.gmra.mrb[0].mxu0 %v60
  %v382 = vpop.f32.mrb[0].mxu0
  %v383 = vadd.f32 %v84, %v382
  %v384 = vpop.f32.mrb[0].mxu0
  %385 = vmatprep.mubr.f32.mxu0 0.0
  %386 = vmatmul.mubr.f32.gmra.mrb[0].mxu0 %v61
  %v387 = vpop.f32.mrb[0].mxu0
  %v388 = vadd.f32 %v84, %v387
  %v389 = vpop.f32.mrb[0].mxu0
  %390 = vmatprep.mubr.f32.mxu0 0.0
  %391 = vmatmul.mubr.f32.gmra.mrb[0].mxu0 %v62
  %v392 = vpop.f32.mrb[0].mxu0
  %v393 = vadd.f32 %v84, %v392
  %v394 = vpop.f32.mrb[0].mxu0
  %395 = vdwg.mxu0
  %v396 = vmax.f32 %v153, 0.0
  %v397 = vmax.f32 %v158, 0.0
  %v398 = vmax.f32 %v163, 0.0
  %v399 = vmax.f32 %v168, 0.0
  %v400 = vmax.f32 %v173, 0.0
  %v401 = vmax.f32 %v178, 0.0
  %v402 = vmax.f32 %v183, 0.0
  %v403 = vmax.f32 %v188, 0.0
  %v404 = vmax.f32 %v193, 0.0
  %v405 = vmax.f32 %v198, 0.0
  %v406 = vmax.f32 %v203, 0.0
  %v407 = vmax.f32 %v208, 0.0
  %v408 = vmax.f32 %v213, 0.0
  %v409 = vmax.f32 %v218, 0.0
  %v410 = vmax.f32 %v223, 0.0
  %v411 = vmax.f32 %v228, 0.0
  %v412 = vmax.f32 %v233, 0.0
  %v413 = vmax.f32 %v238, 0.0
  %v414 = vmax.f32 %v243, 0.0
  %v415 = vmax.f32 %v248, 0.0
  %v416 = vmax.f32 %v253, 0.0
  %v417 = vmax.f32 %v258, 0.0
  %v418 = vmax.f32 %v263, 0.0
  %v419 = vmax.f32 %v268, 0.0
  %v420 = vmax.f32 %v273, 0.0
  %v421 = vmax.f32 %v278, 0.0
  %v422 = vmax.f32 %v283, 0.0
  %v423 = vmax.f32 %v288, 0.0
  %v424 = vmax.f32 %v293, 0.0
  %v425 = vmax.f32 %v298, 0.0
  %v426 = vmax.f32 %v303, 0.0
  %v427 = vmax.f32 %v308, 0.0
  %v428 = vmax.f32 %v313, 0.0
  %v429 = vmax.f32 %v318, 0.0
  %v430 = vmax.f32 %v323, 0.0
  %v431 = vmax.f32 %v328, 0.0
  %v432 = vmax.f32 %v333, 0.0
  %v433 = vmax.f32 %v338, 0.0
  %v434 = vmax.f32 %v343, 0.0
  %v435 = vmax.f32 %v348, 0.0
  %v436 = vmax.f32 %v353, 0.0
  %v437 = vmax.f32 %v358, 0.0
  %v438 = vmax.f32 %v363, 0.0
  %v439 = vmax.f32 %v368, 0.0
  %v440 = vmax.f32 %v373, 0.0
  %v441 = vmax.f32 %v378, 0.0
  %v442 = vmax.f32 %v383, 0.0
  %v443 = vmax.f32 %v388, 0.0
  %v444 = vmax.f32 %v393, 0.0
  %445 = vst [vmem:[%s3] sm:$0xff] %v396
  %446 = vst [vmem:[%s3 + $0x8] sm:$0xff] %v397
  %447 = vst [vmem:[%s3 + $0x10] sm:$0xff] %v398
  %448 = vst [vmem:[%s3 + $0x18] sm:$0xff] %v399
  %449 = vst [vmem:[%s3 + $0x20] sm:$0xff] %v400
  %450 = vst [vmem:[%s3 + $0x28] sm:$0xff] %v401
  %451 = vst [vmem:[%s3 + $0x30] sm:$0xff] %v402
  %452 = vst [vmem:[%s3 + $0x38] sm:$0xff] %v403
  %453 = vst [vmem:[%s3 + $0x40] sm:$0xff] %v404
  %454 = vst [vmem:[%s3 + $0x48] sm:$0xff] %v405
  %455 = vst [vmem:[%s3 + $0x50] sm:$0xff] %v406
  %456 = vst [vmem:[%s3 + $0x58] sm:$0xff] %v407
  %457 = vst [vmem:[%s3 + $0x60] sm:$0xff] %v408
  %458 = vst [vmem:[%s3 + $0x68] sm:$0xff] %v409
  %459 = vst [vmem:[%s3 + $0x70] sm:$0xff] %v410
  %460 = vst [vmem:[%s3 + $0x78] sm:$0xff] %v411
  %461 = vst [vmem:[%s3 + $0x80] sm:$0xff] %v412
  %462 = vst [vmem:[%s3 + $0x88] sm:$0xff] %v413
  %463 = vst [vmem:[%s3 + $0x90] sm:$0xff] %v414
  %464 = vst [vmem:[%s3 + $0x98] sm:$0xff] %v415
  %465 = vst [vmem:[%s3 + $0xa0] sm:$0xff] %v416
  %466 = vst [vmem:[%s3 + $0xa8] sm:$0xff] %v417
  %467 = vst [vmem:[%s3 + $0xb0] sm:$0xff] %v418
  %468 = vst [vmem:[%s3 + $0xb8] sm:$0xff] %v419
  %469 = vst [vmem:[%s3 + $0xc0] sm:$0xff] %v420
  %470 = vst [vmem:[%s3 + $0xc8] sm:$0xff] %v421
  %471 = vst [vmem:[%s3 + $0xd0] sm:$0xff] %v422
  %472 = vst [vmem:[%s3 + $0xd8] sm:$0xff] %v423
  %473 = vst [vmem:[%s3 + $0xe0] sm:$0xff] %v424
  %474 = vst [vmem:[%s3 + $0xe8] sm:$0xff] %v425
  %475 = vst [vmem:[%s3 + $0xf0] sm:$0xff] %v426
  %476 = vst [vmem:[%s3 + $0xf8] sm:$0xff] %v427
  %477 = vst [vmem:[%s3 + $0x100] sm:$0xff] %v428
  %478 = vst [vmem:[%s3 + $0x108] sm:$0xff] %v429
  %479 = vst [vmem:[%s3 + $0x110] sm:$0xff] %v430
  %480 = vst [vmem:[%s3 + $0x118] sm:$0xff] %v431
  %481 = vst [vmem:[%s3 + $0x120] sm:$0xff] %v432
  %482 = vst [vmem:[%s3 + $0x128] sm:$0xff] %v433
  %483 = vst [vmem:[%s3 + $0x130] sm:$0xff] %v434
  %484 = vst [vmem:[%s3 + $0x138] sm:$0xff] %v435
  %485 = vst [vmem:[%s3 + $0x140] sm:$0xff] %v436
  %486 = vst [vmem:[%s3 + $0x148] sm:$0xff] %v437
  %487 = vst [vmem:[%s3 + $0x150] sm:$0xff] %v438
  %488 = vst [vmem:[%s3 + $0x158] sm:$0xff] %v439
  %489 = vst [vmem:[%s3 + $0x160] sm:$0xff] %v440
  %490 = vst [vmem:[%s3 + $0x168] sm:$0xff] %v441
  %491 = vst [vmem:[%s3 + $0x170] sm:$0xff] %v442
  %492 = vst [vmem:[%s3 + $0x178] sm:$0xff] %v443
  %493 = vst [vmem:[%s3 + $0x180] sm:$0xff] %v444
  // Predicated region
  $region14: #{conv_relu_pallas.1} parent=0 // pred_check
    _
  $region15: #{conv_relu_pallas.1} parent=0 // pred_check_branch
    %495 = sbr.rel (0) target = $region17
  $region16: #{conv_relu_pallas.1} parent=0 // pred_region
    _
  $region17: #{conv_relu_pallas.1} parent=0 // pred_fallthru
    _
  // Predicated region
  $region18: #{conv_relu_pallas.1} parent=0 // pred_check
    _
  $region19: #{conv_relu_pallas.1} parent=0 // pred_check_branch
    %497 = sbr.rel (0) target = $region21
  $region20: #{conv_relu_pallas.1} parent=0 // pred_region
    _
  $region21: #{conv_relu_pallas.1} parent=0 // pred_fallthru
    _

</llo_original>
